<compile_context>
chip_gen: v5e
topology: v5e:2x2
jax: 0.10.0
libtpu: 0.0.40
codegen_flags: <defaults>
</compile_context>

<pallas_src>
import functools

import jax
import jax.numpy as jnp
from jax.experimental import pallas as pl
from jax.experimental.pallas import tpu as pltpu

BN_EPS = 1e-5


def _round_up(x, m):
    return ((x + m - 1) // m) * m


def _pad2(a, rows, cols):
    return jnp.pad(a, ((0, rows - a.shape[0]), (0, cols - a.shape[1])))


def mlp_kernel(B, hidden_layers,
               x_ref, w1_ref, b1_ref, wh_ref, bh_ref, g_ref, bt_ref,
               wo_ref, bo_ref, o_ref):
    inv_b = 1.0 / B
    # Row mask excludes padded batch rows from the BatchNorm statistics (hoisted once).
    rows = jax.lax.broadcasted_iota(jnp.int32, (o_ref.shape[0], 1), 0)
    row_mask = (rows < B).astype(jnp.float32)

    # fc1 + ReLU : bf16 MXU operands, f32 accumulate.
    h = jnp.maximum(
        jnp.dot(x_ref[...], w1_ref[...], preferred_element_type=jnp.float32)
        + b1_ref[...], 0.0)

    wh = wh_ref[...]
    bh = bh_ref[...]
    gamma = g_ref[...]
    beta = bt_ref[...]
    # Static unroll: PyTorch reuses the SAME fc_hidden / bn modules every iteration.
    for _ in range(hidden_layers):
        z = jnp.dot(h.astype(wh.dtype), wh,
                    preferred_element_type=jnp.float32) + bh
        # Training-mode BatchNorm: exact full-batch mean + biased variance (two-pass).
        mean = jnp.sum(z * row_mask, axis=0, keepdims=True) * inv_b
        zc = z - mean
        dm = zc * row_mask
        var = jnp.sum(dm * dm, axis=0, keepdims=True) * inv_b
        scale = jax.lax.rsqrt(var + BN_EPS) * gamma          # fold gamma into 1/std
        h = jnp.maximum(zc * scale + beta, 0.0)

    out = jnp.dot(h.astype(wo_ref.dtype), wo_ref[...],
                  preferred_element_type=jnp.float32) + bo_ref[...]
    o_ref[...] = jnp.maximum(out, 0.0)


def mlp_forward(x, params, hidden_layers):
    w1, b1, wh, bh, wo, bo, gamma, beta = params
    B, in_size = x.shape
    hidden = w1.shape[1]
    out_size = wo.shape[1]

    # Lane-dense feature padding (128), sublane-aligned batch padding (8).
    IN_P = _round_up(in_size, 128)
    H_P = _round_up(hidden, 128)
    OUT_P = _round_up(out_size, 128)
    B_P = _round_up(B, 8)

    x_p = _pad2(x, B_P, IN_P).astype(jnp.bfloat16)
    w1_p = _pad2(w1, IN_P, H_P).astype(jnp.bfloat16)
    wh_p = _pad2(wh, H_P, H_P).astype(jnp.bfloat16)
    wo_p = _pad2(wo, H_P, OUT_P).astype(jnp.bfloat16)
    b1_p = _pad2(b1, 1, H_P)
    bh_p = _pad2(bh, 1, H_P)
    g_p = _pad2(gamma, 1, H_P)
    bt_p = _pad2(beta, 1, H_P)
    bo_p = _pad2(bo, 1, OUT_P)

    def full(shape):
        # Full-array block, constant block index: DMA'd once, VMEM-resident.
        return pl.BlockSpec(shape, lambda i: (0, 0))

    in_specs = [
        full((B_P, IN_P)),    # x
        full((IN_P, H_P)),    # w1
        full((1, H_P)),       # b1
        full((H_P, H_P)),     # wh
        full((1, H_P)),       # bh
        full((1, H_P)),       # gamma
        full((1, H_P)),       # beta
        full((H_P, OUT_P)),   # wo
        full((1, OUT_P)),     # bo
    ]

    weight_bytes = (w1_p.size + wh_p.size + wo_p.size) * 2
    small_bytes = (b1_p.size + bh_p.size + g_p.size + bt_p.size + bo_p.size) * 4
    io_bytes = x_p.size * 2 + B_P * OUT_P * 4
    act_bytes = B_P * H_P * 4
    vmem_bytes = io_bytes + weight_bytes + small_bytes + 4 * act_bytes

    compiler_params = pltpu.CompilerParams(
        dimension_semantics=("arbitrary",),
        vmem_limit_bytes=int(min(100 * 2**20, max(4 * 2**20, 2 * vmem_bytes))),
    )
    cost = pl.CostEstimate(
        flops=int(2 * B_P * (IN_P * H_P + hidden_layers * H_P * H_P + H_P * OUT_P)),
        transcendentals=int(hidden_layers * H_P),
        bytes_accessed=int(io_bytes + weight_bytes + small_bytes),
    )

    out_p = pl.pallas_call(
        functools.partial(mlp_kernel, B, hidden_layers),
        out_shape=jax.ShapeDtypeStruct((B_P, OUT_P), jnp.float32),
        grid=(1,),
        in_specs=in_specs,
        out_specs=full((B_P, OUT_P)),
        compiler_params=compiler_params,
        cost_estimate=cost,
    )(x_p, w1_p, b1_p, wh_p, bh_p, g_p, bt_p, wo_p, bo_p)

    return out_p[:B, :out_size]


def mlp_reference(x, params, hidden_layers, *, match_kernel_numerics=True):
    """Pure-JAX reference.  match_kernel_numerics mirrors the kernel's bf16-operand /
    f32-accumulate matmuls; the BN statistics formula is identical (two-pass, biased var)."""
    w1, b1, wh, bh, wo, bo, gamma, beta = params
    cast = (lambda a: a.astype(jnp.bfloat16)) if match_kernel_numerics else (lambda a: a)

    def dot(a, b):
        return jnp.dot(cast(a), cast(b), preferred_element_type=jnp.float32)

    h = jnp.maximum(dot(x, w1) + b1, 0.0)
    for _ in range(hidden_layers):
        z = dot(h, wh) + bh
        mean = jnp.mean(z, axis=0, keepdims=True)
        var = jnp.mean((z - mean) ** 2, axis=0, keepdims=True)
        h = jnp.maximum((z - mean) * jax.lax.rsqrt(var + BN_EPS) * gamma + beta, 0.0)
    return jnp.maximum(dot(h, wo) + bo, 0.0)


def init_params(key, input_size, hidden_size, output_size):
    """PyTorch-style init: U(-1/sqrt(fan_in), 1/sqrt(fan_in)); BN weight=1, bias=0."""
    ks = jax.random.split(key, 6)

    def lin(kw, kb, fan_in, fan_out):
        bound = 1.0 / jnp.sqrt(fan_in)
        w = jax.random.uniform(kw, (fan_in, fan_out), jnp.float32, -bound, bound)
        b = jax.random.uniform(kb, (1, fan_out), jnp.float32, -bound, bound)
        return w, b

    w1, b1 = lin(ks[0], ks[1], input_size, hidden_size)
    wh, bh = lin(ks[2], ks[3], hidden_size, hidden_size)
    wo, bo = lin(ks[4], ks[5], hidden_size, output_size)
    gamma = jnp.ones((1, hidden_size), jnp.float32)
    beta = jnp.zeros((1, hidden_size), jnp.float32)
    return (w1, b1, wh, bh, wo, bo, gamma, beta)


if __name__ == "__main__":
    INPUT_SIZE = 64
    HIDDEN_SIZE = 32
    HIDDEN_LAYERS = 2
    OUTPUT_SIZE = 16
    BATCH = 28        # not a multiple of 8 -> exercises the padded-row masking in BN stats

    key = jax.random.PRNGKey(0)
    kx, kp = jax.random.split(key)
    x = jax.random.normal(kx, (BATCH, INPUT_SIZE), jnp.float32)
    params = init_params(kp, INPUT_SIZE, HIDDEN_SIZE, OUTPUT_SIZE)

    out = jax.block_until_ready(mlp_forward(x, params, HIDDEN_LAYERS))

    ref = mlp_reference(x, params, HIDDEN_LAYERS, match_kernel_numerics=True)
    assert out.shape == (BATCH, OUTPUT_SIZE)
    assert jnp.allclose(out, ref, atol=1e-2, rtol=1e-2), (
        "mismatch vs reference: max abs diff = "
        f"{float(jnp.max(jnp.abs(out - ref)))}")

    print("KERNEL_OK")
</pallas_src>

<mosaic_0001>
module attributes {stable_mosaic.version = 11 : i64} {
  func.func @mlp_kernel(%arg0: i32, %arg1: memref<32x128xbf16, #tpu.memory_space<vmem>>, %arg2: memref<128x128xbf16, #tpu.memory_space<vmem>>, %arg3: memref<1x128xf32, #tpu.memory_space<vmem>>, %arg4: memref<128x128xbf16, #tpu.memory_space<vmem>>, %arg5: memref<1x128xf32, #tpu.memory_space<vmem>>, %arg6: memref<1x128xf32, #tpu.memory_space<vmem>>, %arg7: memref<1x128xf32, #tpu.memory_space<vmem>>, %arg8: memref<128x128xbf16, #tpu.memory_space<vmem>>, %arg9: memref<1x128xf32, #tpu.memory_space<vmem>>, %arg10: memref<32x128xf32, #tpu.memory_space<vmem>>) attributes {dimension_semantics = [#tpu.dimension_semantics<arbitrary>], iteration_bounds = array<i64: 1>, scalar_prefetch = 0 : i64, scratch_operands = 0 : i64, tpu.core_type = #tpu.core_type<tc>, window_params = [{pipeline_mode = #tpu.pipeline_mode<synchronous>, transform_indices = @transform_0, window_bounds = array<i64: 32, 128>}, {pipeline_mode = #tpu.pipeline_mode<synchronous>, transform_indices = @transform_1, window_bounds = array<i64: 128, 128>}, {pipeline_mode = #tpu.pipeline_mode<synchronous>, transform_indices = @transform_2, window_bounds = array<i64: 1, 128>}, {pipeline_mode = #tpu.pipeline_mode<synchronous>, transform_indices = @transform_3, window_bounds = array<i64: 128, 128>}, {pipeline_mode = #tpu.pipeline_mode<synchronous>, transform_indices = @transform_4, window_bounds = array<i64: 1, 128>}, {pipeline_mode = #tpu.pipeline_mode<synchronous>, transform_indices = @transform_5, window_bounds = array<i64: 1, 128>}, {pipeline_mode = #tpu.pipeline_mode<synchronous>, transform_indices = @transform_6, window_bounds = array<i64: 1, 128>}, {pipeline_mode = #tpu.pipeline_mode<synchronous>, transform_indices = @transform_7, window_bounds = array<i64: 128, 128>}, {pipeline_mode = #tpu.pipeline_mode<synchronous>, transform_indices = @transform_8, window_bounds = array<i64: 1, 128>}, {pipeline_mode = #tpu.pipeline_mode<synchronous>, transform_indices = @transform_9, window_bounds = array<i64: 32, 128>}]} {
    %0 = tpu.iota {dimensions = array<i32: 0>} : vector<32x1xi32>
    %c28_i32 = arith.constant 28 : i32
    %1 = vector.broadcast %c28_i32 : i32 to vector<32x1xi32>
    %2 = arith.cmpi slt, %0, %1 : vector<32x1xi32>
    %3 = arith.extui %2 : vector<32x1xi1> to vector<32x1xi32>
    %4 = arith.sitofp %3 : vector<32x1xi32> to vector<32x1xf32>
    %c0 = arith.constant 0 : index
    %c0_0 = arith.constant 0 : index
    %5 = vector.load %arg1[%c0, %c0_0] : memref<32x128xbf16, #tpu.memory_space<vmem>>, vector<32x128xbf16>
    %c0_1 = arith.constant 0 : index
    %c0_2 = arith.constant 0 : index
    %6 = vector.load %arg2[%c0_1, %c0_2] : memref<128x128xbf16, #tpu.memory_space<vmem>>, vector<128x128xbf16>
    %cst = arith.constant dense<0.000000e+00> : vector<32x128xf32>
    %7 = tpu.matmul %5, %6, %cst {dimension_numbers = #tpu.dot_dimension_numbers<[1], [0], [0], [1], [0, 0, 1, 1], [], []>} : vector<32x128xbf16>, vector<128x128xbf16>, vector<32x128xf32> -> vector<32x128xf32>
    %c0_3 = arith.constant 0 : index
    %c0_4 = arith.constant 0 : index
    %8 = vector.load %arg3[%c0_3, %c0_4] : memref<1x128xf32, #tpu.memory_space<vmem>>, vector<1x128xf32>
    %9 = vector.broadcast %8 : vector<1x128xf32> to vector<32x128xf32>
    %10 = arith.addf %7, %9 : vector<32x128xf32>
    %cst_5 = arith.constant 0.000000e+00 : f32
    %11 = vector.broadcast %cst_5 : f32 to vector<32x128xf32>
    %12 = arith.maximumf %10, %11 : vector<32x128xf32>
    %c0_6 = arith.constant 0 : index
    %c0_7 = arith.constant 0 : index
    %13 = vector.load %arg4[%c0_6, %c0_7] : memref<128x128xbf16, #tpu.memory_space<vmem>>, vector<128x128xbf16>
    %c0_8 = arith.constant 0 : index
    %c0_9 = arith.constant 0 : index
    %14 = vector.load %arg5[%c0_8, %c0_9] : memref<1x128xf32, #tpu.memory_space<vmem>>, vector<1x128xf32>
    %c0_10 = arith.constant 0 : index
    %c0_11 = arith.constant 0 : index
    %15 = vector.load %arg6[%c0_10, %c0_11] : memref<1x128xf32, #tpu.memory_space<vmem>>, vector<1x128xf32>
    %c0_12 = arith.constant 0 : index
    %c0_13 = arith.constant 0 : index
    %16 = vector.load %arg7[%c0_12, %c0_13] : memref<1x128xf32, #tpu.memory_space<vmem>>, vector<1x128xf32>
    %17 = arith.truncf %12 : vector<32x128xf32> to vector<32x128xbf16>
    %cst_14 = arith.constant dense<0.000000e+00> : vector<32x128xf32>
    %18 = tpu.matmul %17, %13, %cst_14 {dimension_numbers = #tpu.dot_dimension_numbers<[1], [0], [0], [1], [0, 0, 1, 1], [], []>} : vector<32x128xbf16>, vector<128x128xbf16>, vector<32x128xf32> -> vector<32x128xf32>
    %19 = vector.broadcast %14 : vector<1x128xf32> to vector<32x128xf32>
    %20 = arith.addf %18, %19 : vector<32x128xf32>
    %21 = vector.broadcast %4 : vector<32x1xf32> to vector<32x128xf32>
    %22 = arith.mulf %20, %21 : vector<32x128xf32>
    %cst_15 = arith.constant dense<0.000000e+00> : vector<128xf32>
    %23 = vector.multi_reduction <add>, %22, %cst_15 [0] : vector<32x128xf32> to vector<128xf32>
    %24 = vector.shape_cast %23 : vector<128xf32> to vector<1x128xf32>
    %cst_16 = arith.constant 0.0357142873 : f32
    %25 = vector.broadcast %cst_16 : f32 to vector<1x128xf32>
    %26 = arith.mulf %24, %25 : vector<1x128xf32>
    %27 = vector.broadcast %26 : vector<1x128xf32> to vector<32x128xf32>
    %28 = arith.subf %20, %27 : vector<32x128xf32>
    %29 = vector.broadcast %4 : vector<32x1xf32> to vector<32x128xf32>
    %30 = arith.mulf %28, %29 : vector<32x128xf32>
    %31 = arith.mulf %30, %30 : vector<32x128xf32>
    %cst_17 = arith.constant dense<0.000000e+00> : vector<128xf32>
    %32 = vector.multi_reduction <add>, %31, %cst_17 [0] : vector<32x128xf32> to vector<128xf32>
    %33 = vector.shape_cast %32 : vector<128xf32> to vector<1x128xf32>
    %cst_18 = arith.constant 0.0357142873 : f32
    %34 = vector.broadcast %cst_18 : f32 to vector<1x128xf32>
    %35 = arith.mulf %33, %34 : vector<1x128xf32>
    %cst_19 = arith.constant 9.99999974E-6 : f32
    %36 = vector.broadcast %cst_19 : f32 to vector<1x128xf32>
    %37 = arith.addf %35, %36 : vector<1x128xf32>
    %38 = math.rsqrt %37 : vector<1x128xf32>
    %39 = arith.mulf %38, %15 : vector<1x128xf32>
    %40 = vector.broadcast %39 : vector<1x128xf32> to vector<32x128xf32>
    %41 = arith.mulf %28, %40 : vector<32x128xf32>
    %42 = vector.broadcast %16 : vector<1x128xf32> to vector<32x128xf32>
    %43 = arith.addf %41, %42 : vector<32x128xf32>
    %cst_20 = arith.constant 0.000000e+00 : f32
    %44 = vector.broadcast %cst_20 : f32 to vector<32x128xf32>
    %45 = arith.maximumf %43, %44 : vector<32x128xf32>
    %46 = arith.truncf %45 : vector<32x128xf32> to vector<32x128xbf16>
    %cst_21 = arith.constant dense<0.000000e+00> : vector<32x128xf32>
    %47 = tpu.matmul %46, %13, %cst_21 {dimension_numbers = #tpu.dot_dimension_numbers<[1], [0], [0], [1], [0, 0, 1, 1], [], []>} : vector<32x128xbf16>, vector<128x128xbf16>, vector<32x128xf32> -> vector<32x128xf32>
    %48 = vector.broadcast %14 : vector<1x128xf32> to vector<32x128xf32>
    %49 = arith.addf %47, %48 : vector<32x128xf32>
    %50 = vector.broadcast %4 : vector<32x1xf32> to vector<32x128xf32>
    %51 = arith.mulf %49, %50 : vector<32x128xf32>
    %cst_22 = arith.constant dense<0.000000e+00> : vector<128xf32>
    %52 = vector.multi_reduction <add>, %51, %cst_22 [0] : vector<32x128xf32> to vector<128xf32>
    %53 = vector.shape_cast %52 : vector<128xf32> to vector<1x128xf32>
    %cst_23 = arith.constant 0.0357142873 : f32
    %54 = vector.broadcast %cst_23 : f32 to vector<1x128xf32>
    %55 = arith.mulf %53, %54 : vector<1x128xf32>
    %56 = vector.broadcast %55 : vector<1x128xf32> to vector<32x128xf32>
    %57 = arith.subf %49, %56 : vector<32x128xf32>
    %58 = vector.broadcast %4 : vector<32x1xf32> to vector<32x128xf32>
    %59 = arith.mulf %57, %58 : vector<32x128xf32>
    %60 = arith.mulf %59, %59 : vector<32x128xf32>
    %cst_24 = arith.constant dense<0.000000e+00> : vector<128xf32>
    %61 = vector.multi_reduction <add>, %60, %cst_24 [0] : vector<32x128xf32> to vector<128xf32>
    %62 = vector.shape_cast %61 : vector<128xf32> to vector<1x128xf32>
    %cst_25 = arith.constant 0.0357142873 : f32
    %63 = vector.broadcast %cst_25 : f32 to vector<1x128xf32>
    %64 = arith.mulf %62, %63 : vector<1x128xf32>
    %cst_26 = arith.constant 9.99999974E-6 : f32
    %65 = vector.broadcast %cst_26 : f32 to vector<1x128xf32>
    %66 = arith.addf %64, %65 : vector<1x128xf32>
    %67 = math.rsqrt %66 : vector<1x128xf32>
    %68 = arith.mulf %67, %15 : vector<1x128xf32>
    %69 = vector.broadcast %68 : vector<1x128xf32> to vector<32x128xf32>
    %70 = arith.mulf %57, %69 : vector<32x128xf32>
    %71 = vector.broadcast %16 : vector<1x128xf32> to vector<32x128xf32>
    %72 = arith.addf %70, %71 : vector<32x128xf32>
    %cst_27 = arith.constant 0.000000e+00 : f32
    %73 = vector.broadcast %cst_27 : f32 to vector<32x128xf32>
    %74 = arith.maximumf %72, %73 : vector<32x128xf32>
    %75 = arith.truncf %74 : vector<32x128xf32> to vector<32x128xbf16>
    %c0_28 = arith.constant 0 : index
    %c0_29 = arith.constant 0 : index
    %76 = vector.load %arg8[%c0_28, %c0_29] : memref<128x128xbf16, #tpu.memory_space<vmem>>, vector<128x128xbf16>
    %cst_30 = arith.constant dense<0.000000e+00> : vector<32x128xf32>
    %77 = tpu.matmul %75, %76, %cst_30 {dimension_numbers = #tpu.dot_dimension_numbers<[1], [0], [0], [1], [0, 0, 1, 1], [], []>} : vector<32x128xbf16>, vector<128x128xbf16>, vector<32x128xf32> -> vector<32x128xf32>
    %c0_31 = arith.constant 0 : index
    %c0_32 = arith.constant 0 : index
    %78 = vector.load %arg9[%c0_31, %c0_32] : memref<1x128xf32, #tpu.memory_space<vmem>>, vector<1x128xf32>
    %79 = vector.broadcast %78 : vector<1x128xf32> to vector<32x128xf32>
    %80 = arith.addf %77, %79 : vector<32x128xf32>
    %cst_33 = arith.constant 0.000000e+00 : f32
    %81 = vector.broadcast %cst_33 : f32 to vector<32x128xf32>
    %82 = arith.maximumf %80, %81 : vector<32x128xf32>
    %c0_34 = arith.constant 0 : index
    %c0_35 = arith.constant 0 : index
    %83 = vector.load %arg10[%c0_34, %c0_35] : memref<32x128xf32, #tpu.memory_space<vmem>>, vector<32x128xf32>
    tpu.vector_store %arg10[%c0_34, %c0_35], %82 {strides = array<i32>} : memref<32x128xf32, #tpu.memory_space<vmem>>, vector<32x128xf32>,
    return
  }
  func.func @transform_0(%arg0: i32) -> (i32, i32) {
    %c0_i32 = arith.constant 0 : i32
    %c0_i32_0 = arith.constant 0 : i32
    %c0_i32_1 = arith.constant 0 : i32
    return %c0_i32, %c0_i32_0 : i32, i32
  }
  func.func @transform_1(%arg0: i32) -> (i32, i32) {
    %c0_i32 = arith.constant 0 : i32
    %c0_i32_0 = arith.constant 0 : i32
    %c0_i32_1 = arith.constant 0 : i32
    return %c0_i32, %c0_i32_0 : i32, i32
  }
  func.func @transform_2(%arg0: i32) -> (i32, i32) {
    %c0_i32 = arith.constant 0 : i32
    %c0_i32_0 = arith.constant 0 : i32
    %c0_i32_1 = arith.constant 0 : i32
    return %c0_i32, %c0_i32_0 : i32, i32
  }
  func.func @transform_3(%arg0: i32) -> (i32, i32) {
    %c0_i32 = arith.constant 0 : i32
    %c0_i32_0 = arith.constant 0 : i32
    %c0_i32_1 = arith.constant 0 : i32
    return %c0_i32, %c0_i32_0 : i32, i32
  }
  func.func @transform_4(%arg0: i32) -> (i32, i32) {
    %c0_i32 = arith.constant 0 : i32
    %c0_i32_0 = arith.constant 0 : i32
    %c0_i32_1 = arith.constant 0 : i32
    return %c0_i32, %c0_i32_0 : i32, i32
  }
  func.func @transform_5(%arg0: i32) -> (i32, i32) {
    %c0_i32 = arith.constant 0 : i32
    %c0_i32_0 = arith.constant 0 : i32
    %c0_i32_1 = arith.constant 0 : i32
    return %c0_i32, %c0_i32_0 : i32, i32
  }
  func.func @transform_6(%arg0: i32) -> (i32, i32) {
    %c0_i32 = arith.constant 0 : i32
    %c0_i32_0 = arith.constant 0 : i32
    %c0_i32_1 = arith.constant 0 : i32
    return %c0_i32, %c0_i32_0 : i32, i32
  }
  func.func @transform_7(%arg0: i32) -> (i32, i32) {
    %c0_i32 = arith.constant 0 : i32
    %c0_i32_0 = arith.constant 0 : i32
    %c0_i32_1 = arith.constant 0 : i32
    return %c0_i32, %c0_i32_0 : i32, i32
  }
  func.func @transform_8(%arg0: i32) -> (i32, i32) {
    %c0_i32 = arith.constant 0 : i32
    %c0_i32_0 = arith.constant 0 : i32
    %c0_i32_1 = arith.constant 0 : i32
    return %c0_i32, %c0_i32_0 : i32, i32
  }
  func.func @transform_9(%arg0: i32) -> (i32, i32) {
    %c0_i32 = arith.constant 0 : i32
    %c0_i32_0 = arith.constant 0 : i32
    %c0_i32_1 = arith.constant 0 : i32
    return %c0_i32, %c0_i32_0 : i32, i32
  }
}

</mosaic_0001>

<llo_original>
// kernel: tpu_custom_call.1
$region0: #{tpu_custom_call.1}
  #allocation0 [shape = 'u32[]', space=smem, size = 0x4, offset = 0x4, fixed_abs, tag = 'smem constant byte address 0x4 - core index']
  #allocation1 [shape = 'u32[72,128]{1,0:T(1,128)}', space=vmem, size = 0x9000, scoped, tag = 'internal scratch']
  %s0 = inlined_call_operand.hbm [shape: bf16[32,128], index: 0, kind: input, shape index: {}]
  %s1 = inlined_call_operand.hbm [shape: bf16[128,128], index: 1, kind: input, shape index: {}]
  %s2 = inlined_call_operand.vmem [shape: f32[1,128], index: 2, kind: input, shape index: {}]
  %s3 = inlined_call_operand.hbm [shape: bf16[128,128], index: 3, kind: input, shape index: {}]
  %s4 = inlined_call_operand.vmem [shape: f32[1,128], index: 4, kind: input, shape index: {}]
  %s5 = inlined_call_operand.vmem [shape: f32[1,128], index: 5, kind: input, shape index: {}]
  %s6 = inlined_call_operand.vmem [shape: f32[1,128], index: 6, kind: input, shape index: {}]
  %s7 = inlined_call_operand.hbm [shape: bf16[128,128], index: 7, kind: input, shape index: {}]
  %s8 = inlined_call_operand.vmem [shape: f32[1,128], index: 8, kind: input, shape index: {}]
  %s9 = inlined_call_operand.hbm [shape: f32[32,128], index: 9, kind: output, shape index: {}]
  %s10 = sld [smem:[#allocation0]]
  $region62: #{tpu_custom_call.1} parent=0
    _
  %s12 = ssub.s32 1, %s10
  %s13 = scalar_select 0, %s12, %s10
  $region1: #{tpu_custom_call.1} parent=0
    #allocation2 [shape = 'u8[8192]{0}', space=vmem, size = 0x2000, scoped, tag = 'input window, operand 0, single buffered']
    #allocation3 [shape = 's32[1]{0}', space=sflag, size = 0x4, scoped, tag = 'scoped memory for tpu_custom_call.1']
    #allocation4 [shape = 's32[1]{0}', space=sflag, size = 0x4, scoped, tag = 'scoped memory for tpu_custom_call.1']
    #allocation5 [shape = 'u8[32768]{0}', space=vmem, size = 0x8000, scoped, tag = 'input window, operand 1, single buffered']
    #allocation6 [shape = 's32[1]{0}', space=sflag, size = 0x4, scoped, tag = 'scoped memory for tpu_custom_call.1']
    #allocation7 [shape = 'u8[32768]{0}', space=vmem, size = 0x8000, scoped, tag = 'input window, operand 3, single buffered']
    #allocation8 [shape = 'u8[32768]{0}', space=vmem, size = 0x8000, scoped, tag = 'input window, operand 7, single buffered']
    #allocation9 [shape = 's32[1]{0}', space=sflag, size = 0x4, scoped, tag = 'scoped memory for tpu_custom_call.1']
    #allocation10 [shape = 'u8[16384]{0}', space=vmem, size = 0x4000, scoped, tag = 'output window, operand 0, single buffered']
    %14 = vsyncpa [#allocation3], 0
    %15 = vsyncpa [#allocation6], 0
    %16 = vsyncpa [#allocation9], 0
    %17 = vsyncpa [#allocation4], 0
    // Predicated region
    $region2: #{tpu_custom_call.1} parent=1 // pred_check
      _
    $region3: #{tpu_custom_call.1} parent=1 // pred_check_branch
      %19 = sbr.rel (0) target = $region5
    $region4: #{tpu_custom_call.1} parent=1 // pred_region
      %21 = vsyncadd [#allocation3], 0
      %s22 = sshll.u32 %s0, 4
      %s23 = int_to_ptr.hbm [resolvable:$true] %s22
      %s24 = sshll.u32 [#allocation2], 4
      %s25 = int_to_ptr.vmem [resolvable:$true] %s24
      %30 = dma.hbm_to_vmem [thread:$0]  %s23, 256, %s25, [#allocation3], 64, 64, 4
    $region5: #{tpu_custom_call.1} parent=1 // pred_fallthru
      _
    // Predicated region
    $region6: #{tpu_custom_call.1} parent=1 // pred_check
      _
    $region7: #{tpu_custom_call.1} parent=1 // pred_check_branch
      %32 = sbr.rel (0) target = $region9
    $region8: #{tpu_custom_call.1} parent=1 // pred_region
      %34 = vsyncadd [#allocation6], 0
      %s35 = sshll.u32 %s1, 4
      %s36 = int_to_ptr.hbm [resolvable:$true] %s35
      %s37 = sshll.u32 [#allocation5], 4
      %s38 = int_to_ptr.vmem [resolvable:$true] %s37
      %43 = dma.hbm_to_vmem [thread:$0]  %s36, 1024, %s38, [#allocation6], 64, 64, 4
    $region9: #{tpu_custom_call.1} parent=1 // pred_fallthru
      _
    // Predicated region
    $region10: #{tpu_custom_call.1} parent=1 // pred_check
      _
    $region11: #{tpu_custom_call.1} parent=1 // pred_check_branch
      %45 = sbr.rel (0) target = $region13
    $region12: #{tpu_custom_call.1} parent=1 // pred_region
      _
    $region13: #{tpu_custom_call.1} parent=1 // pred_fallthru
      _
    // Predicated region
    $region14: #{tpu_custom_call.1} parent=1 // pred_check
      _
    $region15: #{tpu_custom_call.1} parent=1 // pred_check_branch
      %47 = sbr.rel (0) target = $region17
    $region16: #{tpu_custom_call.1} parent=1 // pred_region
      %49 = vsyncadd [#allocation6], 0
      %s50 = sshll.u32 %s3, 4
      %s51 = int_to_ptr.hbm [resolvable:$true] %s50
      %s52 = sshll.u32 [#allocation7], 4
      %s53 = int_to_ptr.vmem [resolvable:$true] %s52
      %58 = dma.hbm_to_vmem [thread:$0]  %s51, 1024, %s53, [#allocation6], 64, 64, 4
    $region17: #{tpu_custom_call.1} parent=1 // pred_fallthru
      _
    // Predicated region
    $region18: #{tpu_custom_call.1} parent=1 // pred_check
      _
    $region19: #{tpu_custom_call.1} parent=1 // pred_check_branch
      %60 = sbr.rel (0) target = $region21
    $region20: #{tpu_custom_call.1} parent=1 // pred_region
      _
    $region21: #{tpu_custom_call.1} parent=1 // pred_fallthru
      _
    // Predicated region
    $region22: #{tpu_custom_call.1} parent=1 // pred_check
      _
    $region23: #{tpu_custom_call.1} parent=1 // pred_check_branch
      %62 = sbr.rel (0) target = $region25
    $region24: #{tpu_custom_call.1} parent=1 // pred_region
      _
    $region25: #{tpu_custom_call.1} parent=1 // pred_fallthru
      _
    // Predicated region
    $region26: #{tpu_custom_call.1} parent=1 // pred_check
      _
    $region27: #{tpu_custom_call.1} parent=1 // pred_check_branch
      %64 = sbr.rel (0) target = $region29
    $region28: #{tpu_custom_call.1} parent=1 // pred_region
      _
    $region29: #{tpu_custom_call.1} parent=1 // pred_fallthru
      _
    // Predicated region
    $region30: #{tpu_custom_call.1} parent=1 // pred_check
      _
    $region31: #{tpu_custom_call.1} parent=1 // pred_check_branch
      %66 = sbr.rel (0) target = $region33
    $region32: #{tpu_custom_call.1} parent=1 // pred_region
      %68 = vsyncadd [#allocation9], 0
      %s69 = sshll.u32 %s7, 4
      %s70 = int_to_ptr.hbm [resolvable:$true] %s69
      %s71 = sshll.u32 [#allocation8], 4
      %s72 = int_to_ptr.vmem [resolvable:$true] %s71
      %77 = dma.hbm_to_vmem [thread:$0]  %s70, 1024, %s72, [#allocation9], 64, 64, 4
    $region33: #{tpu_custom_call.1} parent=1 // pred_fallthru
      _
    // Predicated region
    $region34: #{tpu_custom_call.1} parent=1 // pred_check
      _
    $region35: #{tpu_custom_call.1} parent=1 // pred_check_branch
      %79 = sbr.rel (0) target = $region37
    $region36: #{tpu_custom_call.1} parent=1 // pred_region
      _
    $region37: #{tpu_custom_call.1} parent=1 // pred_fallthru
      _
    // Predicated region
    $region38: #{tpu_custom_call.1} parent=1 // pred_check
      _
    $region39: #{tpu_custom_call.1} parent=1 // pred_check_branch
      %81 = sbr.rel (0) target = $region41
    $region40: #{tpu_custom_call.1} parent=1 // pred_region
      %83 = dma.done [#allocation3], 256
    $region41: #{tpu_custom_call.1} parent=1 // pred_fallthru
      _
    // Predicated region
    $region42: #{tpu_custom_call.1} parent=1 // pred_check
      _
    $region43: #{tpu_custom_call.1} parent=1 // pred_check_branch
      %85 = sbr.rel (0) target = $region45
    $region44: #{tpu_custom_call.1} parent=1 // pred_region
      %87 = dma.done [#allocation6], 1024
    $region45: #{tpu_custom_call.1} parent=1 // pred_fallthru
      _
    // Predicated region
    $region46: #{tpu_custom_call.1} parent=1 // pred_check
      _
    $region47: #{tpu_custom_call.1} parent=1 // pred_check_branch
      %89 = sbr.rel (0) target = $region49
    $region48: #{tpu_custom_call.1} parent=1 // pred_region
      %91 = dma.done [#allocation6], 1024
    $region49: #{tpu_custom_call.1} parent=1 // pred_fallthru
      _
    // Predicated region
    $region50: #{tpu_custom_call.1} parent=1 // pred_check
      _
    $region51: #{tpu_custom_call.1} parent=1 // pred_check_branch
      %93 = sbr.rel (0) target = $region53
    $region52: #{tpu_custom_call.1} parent=1 // pred_region
      %95 = dma.done [#allocation9], 1024
    $region53: #{tpu_custom_call.1} parent=1 // pred_fallthru
      _
    %v96 = vlaneseq
    %v97 = vshrl.u32 %v96, 7
    %v98 = vadd.s32 %v97, 8
    %v99 = vadd.s32 %v97, 16
    %v100 = vadd.s32 %v97, 24
    %vm101 = vcmp.lt.s32.totalorder %v97, 28
    %vm102 = vcmp.lt.s32.totalorder %v98, 28
    %vm103 = vcmp.lt.s32.totalorder %v99, 28
    %vm104 = vcmp.lt.s32.totalorder %v100, 28
    %v105 = vsel %vm101, 1, 0
    %v106 = vsel %vm102, 1, 0
    %v107 = vsel %vm103, 1, 0
    %v108 = vsel %vm104, 1, 0
    %v109 = vcvt.s32.f32 %v105
    %v110 = vcvt.s32.f32 %v106
    %v111 = vcvt.s32.f32 %v107
    %v112 = vcvt.s32.f32 %v108
    %v113 = vld [vmem:[#allocation2] sm:$0xf]
    %v114 = vld [vmem:[#allocation2 + $0x4] sm:$0xf]
    %v115 = vld [vmem:[#allocation2 + $0x8] sm:$0xf]
    %v116 = vld [vmem:[#allocation2 + $0xc] sm:$0xf]
    %v117 = vld [vmem:[#allocation5] sm:$0xf]
    %v118 = vld [vmem:[#allocation5 + $0x4] sm:$0xf]
    %v119 = vld [vmem:[#allocation5 + $0x8] sm:$0xf]
    %v120 = vld [vmem:[#allocation5 + $0xc] sm:$0xf]
    %v121 = vld [vmem:[#allocation5 + $0x10] sm:$0xf]
    %v122 = vld [vmem:[#allocation5 + $0x14] sm:$0xf]
    %v123 = vld [vmem:[#allocation5 + $0x18] sm:$0xf]
    %v124 = vld [vmem:[#allocation5 + $0x1c] sm:$0xf]
    %v125 = vld [vmem:[#allocation5 + $0x20] sm:$0xf]
    %v126 = vld [vmem:[#allocation5 + $0x24] sm:$0xf]
    %v127 = vld [vmem:[#allocation5 + $0x28] sm:$0xf]
    %v128 = vld [vmem:[#allocation5 + $0x2c] sm:$0xf]
    %v129 = vld [vmem:[#allocation5 + $0x30] sm:$0xf]
    %v130 = vld [vmem:[#allocation5 + $0x34] sm:$0xf]
    %v131 = vld [vmem:[#allocation5 + $0x38] sm:$0xf]
    %v132 = vld [vmem:[#allocation5 + $0x3c] sm:$0xf]
    %v133 = vld [vmem:[%s2] sm:$0x1]
    %v135 = vperm.slane %v133, 0
    %v141 = vunpack.c.l.b16 %v113
    %v142 = vunpack.c.l.b16 %v114
    %v143 = vunpack.c.l.b16 %v115
    %v144 = vunpack.c.l.b16 %v116
    %v145 = vpack.c.b16 %v142, %v141
    %v146 = vpack.c.b16 %v144, %v143
    %v165 = vunpack.c.l.b16 %v117
    %v166 = vunpack.c.l.b16 %v118
    %v167 = vunpack.c.l.b16 %v119
    %v168 = vunpack.c.l.b16 %v120
    %v169 = vunpack.c.l.b16 %v121
    %v170 = vunpack.c.l.b16 %v122
    %v171 = vunpack.c.l.b16 %v123
    %v172 = vunpack.c.l.b16 %v124
    %v173 = vunpack.c.l.b16 %v125
    %v174 = vunpack.c.l.b16 %v126
    %v175 = vunpack.c.l.b16 %v127
    %v176 = vunpack.c.l.b16 %v128
    %v177 = vunpack.c.l.b16 %v129
    %v178 = vunpack.c.l.b16 %v130
    %v179 = vunpack.c.l.b16 %v131
    %v180 = vunpack.c.l.b16 %v132
    %v181 = vpack.c.b16 %v166, %v165
    %v182 = vpack.c.b16 %v168, %v167
    %v183 = vpack.c.b16 %v170, %v169
    %v184 = vpack.c.b16 %v172, %v171
    %v185 = vpack.c.b16 %v174, %v173
    %v186 = vpack.c.b16 %v176, %v175
    %v187 = vpack.c.b16 %v178, %v177
    %v188 = vpack.c.b16 %v180, %v179
    %197 = vmatpush.bf16.msra.mxu0 %v188
    %198 = vmatpush.bf16.msra.mxu0 %v187
    %199 = vmatpush.bf16.msra.mxu0 %v186
    %200 = vmatpush.bf16.msra.mxu0 %v185
    %201 = vmatpush.bf16.msra.mxu0 %v184
    %202 = vmatpush.bf16.msra.mxu0 %v183
    %203 = vmatpush.bf16.msra.mxu0 %v182
    %204 = vmatpush.bf16.msra.mxu0 %v181
    %205 = vmatmul.bf16.gmra.mxu0 %v145
    %v206 = vpop.f32.mrf.mxu0
    %v207 = vadd.f32 %v135, %v206
    %v208 = vpop.f32.mrf.mxu0
    %v209 = vadd.f32 %v135, %v208
    %210 = vmatmul.bf16.gmra.mxu0 %v146
    %v211 = vpop.f32.mrf.mxu0
    %v212 = vadd.f32 %v135, %v211
    %v213 = vpop.f32.mrf.mxu0
    %v214 = vadd.f32 %v135, %v213
    %215 = vdwg.mxu0
    %v216 = vmax.f32 %v207, 0.0
    %v217 = vmax.f32 %v209, 0.0
    %v218 = vmax.f32 %v212, 0.0
    %v219 = vmax.f32 %v214, 0.0
    %v220 = vld [vmem:[#allocation7] sm:$0xf]
    %v221 = vld [vmem:[#allocation7 + $0x4] sm:$0xf]
    %v222 = vld [vmem:[#allocation7 + $0x8] sm:$0xf]
    %v223 = vld [vmem:[#allocation7 + $0xc] sm:$0xf]
    %v224 = vld [vmem:[#allocation7 + $0x10] sm:$0xf]
    %v225 = vld [vmem:[#allocation7 + $0x14] sm:$0xf]
    %v226 = vld [vmem:[#allocation7 + $0x18] sm:$0xf]
    %v227 = vld [vmem:[#allocation7 + $0x1c] sm:$0xf]
    %v228 = vld [vmem:[#allocation7 + $0x20] sm:$0xf]
    %v229 = vld [vmem:[#allocation7 + $0x24] sm:$0xf]
    %v230 = vld [vmem:[#allocation7 + $0x28] sm:$0xf]
    %v231 = vld [vmem:[#allocation7 + $0x2c] sm:$0xf]
    %v232 = vld [vmem:[#allocation7 + $0x30] sm:$0xf]
    %v233 = vld [vmem:[#allocation7 + $0x34] sm:$0xf]
    %v234 = vld [vmem:[#allocation7 + $0x38] sm:$0xf]
    %v235 = vld [vmem:[#allocation7 + $0x3c] sm:$0xf]
    %v236 = vld [vmem:[%s4] sm:$0x1]
    %v237 = vld [vmem:[%s5] sm:$0x1]
    %v238 = vld [vmem:[%s6] sm:$0x1]
    %v239 = vpack.c.bf16 %v217, %v216
    %v240 = vpack.c.bf16 %v219, %v218
    %v242 = vperm.slane %v236, 0
    %v260 = vunpack.c.l.b16 %v220
    %v261 = vunpack.c.l.b16 %v221
    %v262 = vunpack.c.l.b16 %v222
    %v263 = vunpack.c.l.b16 %v223
    %v264 = vunpack.c.l.b16 %v224
    %v265 = vunpack.c.l.b16 %v225
    %v266 = vunpack.c.l.b16 %v226
    %v267 = vunpack.c.l.b16 %v227
    %v268 = vunpack.c.l.b16 %v228
    %v269 = vunpack.c.l.b16 %v229
    %v270 = vunpack.c.l.b16 %v230
    %v271 = vunpack.c.l.b16 %v231
    %v272 = vunpack.c.l.b16 %v232
    %v273 = vunpack.c.l.b16 %v233
    %v274 = vunpack.c.l.b16 %v234
    %v275 = vunpack.c.l.b16 %v235
    %v276 = vpack.c.b16 %v261, %v260
    %v277 = vpack.c.b16 %v263, %v262
    %v278 = vpack.c.b16 %v265, %v264
    %v279 = vpack.c.b16 %v267, %v266
    %v280 = vpack.c.b16 %v269, %v268
    %v281 = vpack.c.b16 %v271, %v270
    %v282 = vpack.c.b16 %v273, %v272
    %v283 = vpack.c.b16 %v275, %v274
    %292 = vmatpush.bf16.msra.mxu0 %v283
    %293 = vmatpush.bf16.msra.mxu0 %v282
    %294 = vmatpush.bf16.msra.mxu0 %v281
    %295 = vmatpush.bf16.msra.mxu0 %v280
    %296 = vmatpush.bf16.msra.mxu0 %v279
    %297 = vmatpush.bf16.msra.mxu0 %v278
    %298 = vmatpush.bf16.msra.mxu0 %v277
    %299 = vmatpush.bf16.msra.mxu0 %v276
    %300 = vmatmul.bf16.gmra.mxu0 %v239
    %v301 = vpop.f32.mrf.mxu0
    %v302 = vadd.f32 %v242, %v301
    %v303 = vpop.f32.mrf.mxu0
    %v304 = vadd.f32 %v242, %v303
    %305 = vmatmul.bf16.gmra.mxu0 %v240
    %v306 = vpop.f32.mrf.mxu0
    %v307 = vadd.f32 %v242, %v306
    %v308 = vpop.f32.mrf.mxu0
    %v309 = vadd.f32 %v242, %v308
    %310 = vdwg.mxu0
    %v311 = vmul.f32 %v302, %v109
    %v312 = vmul.f32 %v304, %v110
    %v313 = vmul.f32 %v307, %v111
    %v314 = vmul.f32 %v309, %v112
    %v315 = vadd.f32 %v311, %v312
    %v316 = vadd.f32 %v315, %v313
    %v317 = vadd.f32 %v316, %v314
    %v318 = vrot.slane %v317, 4
    %v319 = vadd.f32 %v317, %v318
    %v320 = vrot.slane %v319, 2
    %v321 = vadd.f32 %v319, %v320
    %v322 = vrot.slane %v321, 1
    %v323 = vadd.f32 %v321, %v322
    %v324 = vmul.f32 %v323, 0.035714287
    %v325 = vsub.f32 %v302, %v324
    %v326 = vsub.f32 %v304, %v324
    %v327 = vsub.f32 %v307, %v324
    %v328 = vsub.f32 %v309, %v324
    %v329 = vmul.f32 %v325, %v109
    %v330 = vmul.f32 %v326, %v110
    %v331 = vmul.f32 %v327, %v111
    %v332 = vmul.f32 %v328, %v112
    %v333 = vmul.f32 %v329, %v329
    %v334 = vmul.f32 %v330, %v330
    %v335 = vmul.f32 %v331, %v331
    %v336 = vmul.f32 %v332, %v332
    %v337 = vadd.f32 %v333, %v334
    %v338 = vadd.f32 %v337, %v335
    %v339 = vadd.f32 %v338, %v336
    %v340 = vrot.slane %v339, 4
    %v341 = vadd.f32 %v339, %v340
    %v342 = vrot.slane %v341, 2
    %v343 = vadd.f32 %v341, %v342
    %v344 = vrot.slane %v343, 1
    %v345 = vadd.f32 %v343, %v344
    %v346 = vmul.f32 %v345, 0.035714287
    %v347 = vadd.f32 %v346, 1e-05
    %v348 = vrsqrt.pop %v347
    %v349 = vmul.f32 %v348, %v347
    %v350 = vmul.f32 %v349, %v348
    %v351 = vmul.f32 0.5, %v350
    %v352 = vsub.f32 1.5, %v351
    %v353 = vmul.f32 %v348, %v352
    %vm354 = vweird.f32 %v347
    %vm355 = vweird.f32 %v348
    %vm356 = vmor %vm354, %vm355
    %v357 = vsel %vm356, %v348, %v353
    %v358 = vmul.f32 %v357, %v237
    %v359 = vperm.slane %v358, 0
    %v360 = vmul.f32 %v325, %v359
    %v361 = vmul.f32 %v326, %v359
    %v362 = vmul.f32 %v327, %v359
    %v363 = vmul.f32 %v328, %v359
    %v365 = vperm.slane %v238, 0
    %v367 = vadd.f32 %v360, %v365
    %v368 = vadd.f32 %v361, %v365
    %v369 = vadd.f32 %v362, %v365
    %v370 = vadd.f32 %v363, %v365
    %v371 = vmax.f32 %v367, 0.0
    %v372 = vmax.f32 %v368, 0.0
    %v373 = vmax.f32 %v369, 0.0
    %v374 = vmax.f32 %v370, 0.0
    %v375 = vpack.c.bf16 %v372, %v371
    %v376 = vpack.c.bf16 %v374, %v373
    %377 = vmatpush.bf16.msra.mxu0 %v283
    %378 = vmatpush.bf16.msra.mxu0 %v282
    %379 = vmatpush.bf16.msra.mxu0 %v281
    %380 = vmatpush.bf16.msra.mxu0 %v280
    %381 = vmatpush.bf16.msra.mxu0 %v279
    %382 = vmatpush.bf16.msra.mxu0 %v278
    %383 = vmatpush.bf16.msra.mxu0 %v277
    %384 = vmatpush.bf16.msra.mxu0 %v276
    %385 = vmatmul.bf16.gmra.mxu0 %v375
    %v386 = vpop.f32.mrf.mxu0
    %v387 = vadd.f32 %v242, %v386
    %v388 = vpop.f32.mrf.mxu0
    %v389 = vadd.f32 %v242, %v388
    %390 = vmatmul.bf16.gmra.mxu0 %v376
    %v391 = vpop.f32.mrf.mxu0
    %v392 = vadd.f32 %v242, %v391
    %v393 = vpop.f32.mrf.mxu0
    %v394 = vadd.f32 %v242, %v393
    %395 = vdwg.mxu0
    %v396 = vmul.f32 %v387, %v109
    %v397 = vmul.f32 %v389, %v110
    %v398 = vmul.f32 %v392, %v111
    %v399 = vmul.f32 %v394, %v112
    %v400 = vadd.f32 %v396, %v397
    %v401 = vadd.f32 %v400, %v398
    %v402 = vadd.f32 %v401, %v399
    %v403 = vrot.slane %v402, 4
    %v404 = vadd.f32 %v402, %v403
    %v405 = vrot.slane %v404, 2
    %v406 = vadd.f32 %v404, %v405
    %v407 = vrot.slane %v406, 1
    %v408 = vadd.f32 %v406, %v407
    %v409 = vmul.f32 %v408, 0.035714287
    %v410 = vsub.f32 %v387, %v409
    %v411 = vsub.f32 %v389, %v409
    %v412 = vsub.f32 %v392, %v409
    %v413 = vsub.f32 %v394, %v409
    %v414 = vmul.f32 %v410, %v109
    %v415 = vmul.f32 %v411, %v110
    %v416 = vmul.f32 %v412, %v111
    %v417 = vmul.f32 %v413, %v112
    %v418 = vmul.f32 %v414, %v414
    %v419 = vmul.f32 %v415, %v415
    %v420 = vmul.f32 %v416, %v416
    %v421 = vmul.f32 %v417, %v417
    %v422 = vadd.f32 %v418, %v419
    %v423 = vadd.f32 %v422, %v420
    %v424 = vadd.f32 %v423, %v421
    %v425 = vrot.slane %v424, 4
    %v426 = vadd.f32 %v424, %v425
    %v427 = vrot.slane %v426, 2
    %v428 = vadd.f32 %v426, %v427
    %v429 = vrot.slane %v428, 1
    %v430 = vadd.f32 %v428, %v429
    %v431 = vmul.f32 %v430, 0.035714287
    %v432 = vadd.f32 %v431, 1e-05
    %v433 = vrsqrt.pop %v432
    %v434 = vmul.f32 %v433, %v432
    %v435 = vmul.f32 %v434, %v433
    %v436 = vmul.f32 0.5, %v435
    %v437 = vsub.f32 1.5, %v436
    %v438 = vmul.f32 %v433, %v437
    %vm439 = vweird.f32 %v432
    %vm440 = vweird.f32 %v433
    %vm441 = vmor %vm439, %vm440
    %v442 = vsel %vm441, %v433, %v438
    %v443 = vmul.f32 %v442, %v237
    %v444 = vperm.slane %v443, 0
    %v445 = vmul.f32 %v410, %v444
    %v446 = vmul.f32 %v411, %v444
    %v447 = vmul.f32 %v412, %v444
    %v448 = vmul.f32 %v413, %v444
    %v449 = vadd.f32 %v445, %v365
    %v450 = vadd.f32 %v446, %v365
    %v451 = vadd.f32 %v447, %v365
    %v452 = vadd.f32 %v448, %v365
    %v453 = vmax.f32 %v449, 0.0
    %v454 = vmax.f32 %v450, 0.0
    %v455 = vmax.f32 %v451, 0.0
    %v456 = vmax.f32 %v452, 0.0
    %v457 = vpack.c.bf16 %v454, %v453
    %v458 = vpack.c.bf16 %v456, %v455
    %v459 = vld [vmem:[#allocation8] sm:$0xf]
    %v460 = vld [vmem:[#allocation8 + $0x4] sm:$0xf]
    %v461 = vld [vmem:[#allocation8 + $0x8] sm:$0xf]
    %v462 = vld [vmem:[#allocation8 + $0xc] sm:$0xf]
    %v463 = vld [vmem:[#allocation8 + $0x10] sm:$0xf]
    %v464 = vld [vmem:[#allocation8 + $0x14] sm:$0xf]
    %v465 = vld [vmem:[#allocation8 + $0x18] sm:$0xf]
    %v466 = vld [vmem:[#allocation8 + $0x1c] sm:$0xf]
    %v467 = vld [vmem:[#allocation8 + $0x20] sm:$0xf]
    %v468 = vld [vmem:[#allocation8 + $0x24] sm:$0xf]
    %v469 = vld [vmem:[#allocation8 + $0x28] sm:$0xf]
    %v470 = vld [vmem:[#allocation8 + $0x2c] sm:$0xf]
    %v471 = vld [vmem:[#allocation8 + $0x30] sm:$0xf]
    %v472 = vld [vmem:[#allocation8 + $0x34] sm:$0xf]
    %v473 = vld [vmem:[#allocation8 + $0x38] sm:$0xf]
    %v474 = vld [vmem:[#allocation8 + $0x3c] sm:$0xf]
    %v475 = vld [vmem:[%s8] sm:$0x1]
    %v477 = vperm.slane %v475, 0
    %v495 = vunpack.c.l.b16 %v459
    %v496 = vunpack.c.l.b16 %v460
    %v497 = vunpack.c.l.b16 %v461
    %v498 = vunpack.c.l.b16 %v462
    %v499 = vunpack.c.l.b16 %v463
    %v500 = vunpack.c.l.b16 %v464
    %v501 = vunpack.c.l.b16 %v465
    %v502 = vunpack.c.l.b16 %v466
    %v503 = vunpack.c.l.b16 %v467
    %v504 = vunpack.c.l.b16 %v468
    %v505 = vunpack.c.l.b16 %v469
    %v506 = vunpack.c.l.b16 %v470
    %v507 = vunpack.c.l.b16 %v471
    %v508 = vunpack.c.l.b16 %v472
    %v509 = vunpack.c.l.b16 %v473
    %v510 = vunpack.c.l.b16 %v474
    %v511 = vpack.c.b16 %v496, %v495
    %v512 = vpack.c.b16 %v498, %v497
    %v513 = vpack.c.b16 %v500, %v499
    %v514 = vpack.c.b16 %v502, %v501
    %v515 = vpack.c.b16 %v504, %v503
    %v516 = vpack.c.b16 %v506, %v505
    %v517 = vpack.c.b16 %v508, %v507
    %v518 = vpack.c.b16 %v510, %v509
    %527 = vmatpush.bf16.msra.mxu0 %v518
    %528 = vmatpush.bf16.msra.mxu0 %v517
    %529 = vmatpush.bf16.msra.mxu0 %v516
    %530 = vmatpush.bf16.msra.mxu0 %v515
    %531 = vmatpush.bf16.msra.mxu0 %v514
    %532 = vmatpush.bf16.msra.mxu0 %v513
    %533 = vmatpush.bf16.msra.mxu0 %v512
    %534 = vmatpush.bf16.msra.mxu0 %v511
    %535 = vmatmul.bf16.gmra.mxu0 %v457
    %v536 = vpop.f32.mrf.mxu0
    %v537 = vadd.f32 %v477, %v536
    %v538 = vpop.f32.mrf.mxu0
    %v539 = vadd.f32 %v477, %v538
    %540 = vmatmul.bf16.gmra.mxu0 %v458
    %v541 = vpop.f32.mrf.mxu0
    %v542 = vadd.f32 %v477, %v541
    %v543 = vpop.f32.mrf.mxu0
    %v544 = vadd.f32 %v477, %v543
    %545 = vdwg.mxu0
    %v546 = vmax.f32 %v537, 0.0
    %v547 = vmax.f32 %v539, 0.0
    %v548 = vmax.f32 %v542, 0.0
    %v549 = vmax.f32 %v544, 0.0
    %550 = vst [vmem:[#allocation10] sm:$0xff] %v546
    %551 = vst [vmem:[#allocation10 + $0x8] sm:$0xff] %v547
    %552 = vst [vmem:[#allocation10 + $0x10] sm:$0xff] %v548
    %553 = vst [vmem:[#allocation10 + $0x18] sm:$0xff] %v549
    // Predicated region
    $region54: #{tpu_custom_call.1} parent=1 // pred_check
      _
    $region55: #{tpu_custom_call.1} parent=1 // pred_check_branch
      %555 = sbr.rel (0) target = $region57
    $region56: #{tpu_custom_call.1} parent=1 // pred_region
      %557 = vsyncadd [#allocation4], 0
      %s558 = sshll.u32 [#allocation10], 4
      %s559 = int_to_ptr.vmem [resolvable:$true] %s558
      %s560 = sshll.u32 %s9, 4
      %s561 = int_to_ptr.hbm [resolvable:$true] %s560
      %566 = dma.vmem_to_hbm [thread:$0]  %s559, 512, %s561, [#allocation4], 128, 128, 8
    $region57: #{tpu_custom_call.1} parent=1 // pred_fallthru
      _
    // Predicated region
    $region58: #{tpu_custom_call.1} parent=1 // pred_check
      _
    $region59: #{tpu_custom_call.1} parent=1 // pred_check_branch
      %568 = sbr.rel (0) target = $region61
    $region60: #{tpu_custom_call.1} parent=1 // pred_region
      %570 = dma.done [#allocation4], 512
    $region61: #{tpu_custom_call.1} parent=1 // pred_fallthru
      _
    %571 = vsyncpa [#allocation3], 1
    %572 = vsyncpa [#allocation6], 1
    %573 = vsyncpa [#allocation9], 1
    %574 = vsyncpa [#allocation4], 1

</llo_original>
